<compile_context>
chip_gen: v5e
topology: v5e:2x2
jax: 0.10.0
libtpu: 0.0.40
codegen_flags: <defaults>
</compile_context>

<pallas_src>
import functools

import jax
import jax.numpy as jnp
from jax import lax
from jax.experimental import pallas as pl
from jax.experimental.pallas import tpu as pltpu

_LANE = 128
_SUBLANE = 8
_VMEM_LIMIT_BYTES = 64 * 1024 * 1024    # <= physical VMEM on v5e/v6e/v7x
_STRIP_BUDGET_BYTES = 40 * 1024 * 1024  # live block bytes (double-buffered + temps)


def _tile(dim, unit, cap):
    """Tile size: a multiple of `unit` capped at `cap`; the full dim when small.

    Pair with a cdiv grid; ragged edges are handled by Pallas block padding
    (plus explicit masking where a reduction would otherwise be polluted).
    `cap` must itself be a multiple of `unit`.
    """
    if dim <= unit:
        return dim
    return max(unit, min(cap, (dim // unit) * unit))


def _fused_per_col_bytes(B, itemsize):
    # 2 double-buffered x blocks + 2 double-buffered out blocks + ~2 f32 temps.
    return (4 * itemsize + 8) * B


def _fused_fits(B, F, itemsize):
    return _fused_per_col_bytes(B, itemsize) * min(F, _LANE) <= _STRIP_BUDGET_BYTES


def _fused_feature_tile(B, F, itemsize):
    per_col = _fused_per_col_bytes(B, itemsize)
    cap = max(_LANE, ((_STRIP_BUDGET_BYTES // max(per_col, 1)) // _LANE) * _LANE)
    cap = min(cap, 2048)
    if F >= 2 * _LANE:
        # Keep >= 2 feature tiles so both v7x TensorCores get work.
        cap = min(cap, max(_LANE, ((F // 2) // _LANE) * _LANE))
    return _tile(F, _LANE, cap)


# --------------------------------------------------------------------------
# Fused training kernel: mean + blend + subtract in one HBM pass over x.
# --------------------------------------------------------------------------
def _fused_train_kernel(x_ref, rm_ref, out_ref, mu_ref, *, inv_b, momentum):
    xf = x_ref[...].astype(jnp.float32)                        # (B, tf)
    mu_batch = jnp.sum(xf, axis=0, keepdims=True) * inv_b      # (1, tf)
    mu = momentum * mu_batch + (1.0 - momentum) * rm_ref[...]  # rm is f32
    out_ref[...] = (xf - mu).astype(out_ref.dtype)
    mu_ref[...] = mu


def _fused_train(x, rm2d, momentum):
    B, F = x.shape
    itemsize = jnp.dtype(x.dtype).itemsize
    tf = _fused_feature_tile(B, F, itemsize)
    kernel = functools.partial(
        _fused_train_kernel, inv_b=1.0 / float(B), momentum=float(momentum)
    )
    return pl.pallas_call(
        kernel,
        out_shape=(
            jax.ShapeDtypeStruct((B, F), x.dtype),
            jax.ShapeDtypeStruct((1, F), jnp.float32),
        ),
        grid_spec=pltpu.PrefetchScalarGridSpec(
            num_scalar_prefetch=0,
            grid=(pl.cdiv(F, tf),),
            in_specs=[
                pl.BlockSpec((B, tf), lambda j: (0, j)),   # x column strip
                pl.BlockSpec((1, tf), lambda j: (0, j)),   # running_mean tile
            ],
            out_specs=[
                pl.BlockSpec((B, tf), lambda j: (0, j)),   # out column strip
                pl.BlockSpec((1, tf), lambda j: (0, j)),   # blended mean tile
            ],
        ),
        compiler_params=pltpu.CompilerParams(
            dimension_semantics=("parallel",),
            vmem_limit_bytes=_VMEM_LIMIT_BYTES,
        ),
        cost_estimate=pl.CostEstimate(
            flops=int(2 * B * F + 4 * F),
            transcendentals=0,
            bytes_accessed=int(2 * B * F * itemsize + 3 * F * 4),
        ),
    )(x, rm2d)


# --------------------------------------------------------------------------
# Fallback path (very large B): two-pass mean reduction + elementwise subtract.
# --------------------------------------------------------------------------
def _batch_mean_kernel(x_ref, rm_ref, mu_ref, acc_ref, *, b_total, tb, inv_b,
                       momentum, ragged):
    i = pl.program_id(1)  # batch-tile index (reduction axis, last)

    @pl.when(i == 0)
    def _init():
        acc_ref[...] = jnp.zeros_like(acc_ref)

    xf = x_ref[...].astype(jnp.float32)  # (tb, tf)
    if ragged:
        row = lax.broadcasted_iota(jnp.int32, xf.shape, 0) + i * tb
        xf = jnp.where(row < b_total, xf, 0.0)
    # (8, tf) accumulator: pure VPU adds each step; the 8->1 cross-sublane
    # (XLU) collapse happens once in the finalize branch.
    acc_ref[...] += jnp.sum(xf.reshape(tb // _SUBLANE, _SUBLANE, xf.shape[1]), axis=0)

    @pl.when(i == pl.num_programs(1) - 1)
    def _finalize():
        mu_batch = jnp.sum(acc_ref[...], axis=0, keepdims=True) * inv_b
        mu_ref[...] = momentum * mu_batch + (1.0 - momentum) * rm_ref[...]


def _compute_updated_mean_two_pass(x, rm2d, momentum):
    B, F = x.shape
    itemsize = jnp.dtype(x.dtype).itemsize
    tb = _tile(B, _SUBLANE, 1024)
    tf = _tile(F, _LANE, 1024)
    assert tb % _SUBLANE == 0, "two-pass path requires B >= 8"
    kernel = functools.partial(
        _batch_mean_kernel,
        b_total=B, tb=tb, inv_b=1.0 / float(B), momentum=float(momentum),
        ragged=(B % tb != 0),
    )
    return pl.pallas_call(
        kernel,
        out_shape=jax.ShapeDtypeStruct((1, F), jnp.float32),
        grid_spec=pltpu.PrefetchScalarGridSpec(
            num_scalar_prefetch=0,
            grid=(pl.cdiv(F, tf), pl.cdiv(B, tb)),  # reduction (batch) axis last
            in_specs=[
                pl.BlockSpec((tb, tf), lambda j, i: (i, j)),   # x
                pl.BlockSpec((1, tf), lambda j, i: (0, j)),    # running_mean
            ],
            out_specs=pl.BlockSpec((1, tf), lambda j, i: (0, j)),
            scratch_shapes=[pltpu.VMEM((_SUBLANE, tf), jnp.float32)],
        ),
        compiler_params=pltpu.CompilerParams(
            dimension_semantics=("parallel", "arbitrary"),
            vmem_limit_bytes=_VMEM_LIMIT_BYTES,
        ),
        cost_estimate=pl.CostEstimate(
            flops=int(B * F + 4 * F),
            transcendentals=0,
            bytes_accessed=int(B * F * itemsize + 2 * F * 4),
        ),
    )(x, rm2d)


def _subtract_mean_kernel(x_ref, mu_ref, o_ref):
    # Subtract in f32, cast at the end (matches reference for low-precision x).
    o_ref[...] = (x_ref[...].astype(jnp.float32) - mu_ref[...]).astype(o_ref.dtype)


def _subtract_mean(x, mu2d):
    B, F = x.shape
    itemsize = jnp.dtype(x.dtype).itemsize
    tb = _tile(B, _SUBLANE, 512)
    tf = _tile(F, _LANE, 1024)
    return pl.pallas_call(
        _subtract_mean_kernel,
        out_shape=jax.ShapeDtypeStruct((B, F), x.dtype),
        grid_spec=pltpu.PrefetchScalarGridSpec(
            num_scalar_prefetch=0,
            grid=(pl.cdiv(B, tb), pl.cdiv(F, tf)),
            in_specs=[
                pl.BlockSpec((tb, tf), lambda i, j: (i, j)),   # x
                pl.BlockSpec((1, tf), lambda i, j: (0, j)),    # mean (broadcast)
            ],
            out_specs=pl.BlockSpec((tb, tf), lambda i, j: (i, j)),
        ),
        compiler_params=pltpu.CompilerParams(
            dimension_semantics=("parallel", "parallel"),
            vmem_limit_bytes=_VMEM_LIMIT_BYTES,
        ),
        cost_estimate=pl.CostEstimate(
            flops=int(B * F),
            transcendentals=0,
            bytes_accessed=int(2 * B * F * itemsize + F * 4),
        ),
    )(x, mu2d)


# --------------------------------------------------------------------------
# Public wrapper
# --------------------------------------------------------------------------
def mean_only_batch_norm(x, running_mean, momentum=0.999, training=True,
                         _force_two_pass=False):
    """JAX/Pallas equivalent of MeanOnlyBatchNorm.forward.

    x:            (batch, num_features) float array
    running_mean: (num_features,) float array (buffer)
    Returns (out, new_running_mean).
    """
    assert x.ndim == 2, "MeanOnlyBatchNorm expects (batch, num_features) input"
    B, F = x.shape
    assert running_mean.shape == (F,)
    rm2d = jnp.reshape(running_mean, (1, F)).astype(jnp.float32)
    itemsize = jnp.dtype(x.dtype).itemsize

    if training:
        use_fused = (_fused_fits(B, F, itemsize) or B < _SUBLANE) and not _force_two_pass
        if use_fused:
            out, mu2d = _fused_train(x, rm2d, momentum)
        else:
            mu2d = _compute_updated_mean_two_pass(x, rm2d, momentum)
            out = _subtract_mean(x, mu2d)
        new_running_mean = mu2d[0].astype(running_mean.dtype)
        return out, new_running_mean
    else:
        out = _subtract_mean(x, rm2d)
        return out, running_mean


def _reference(x, running_mean, momentum, training):
    if training:
        mu = jnp.mean(x.astype(jnp.float32), axis=0, keepdims=True)
        mu = momentum * mu + (1.0 - momentum) * running_mean[None, :].astype(jnp.float32)
        return (x.astype(jnp.float32) - mu).astype(x.dtype), mu[0].astype(running_mean.dtype)
    out = (x.astype(jnp.float32) - running_mean[None, :].astype(jnp.float32)).astype(x.dtype)
    return out, running_mean


if __name__ == "__main__":
    key = jax.random.PRNGKey(0)
    k1, k2, k3, k4 = jax.random.split(key, 4)
    momentum = 0.999

    # 1) Small shape implied by the module: (batch, num_features).
    B, F = 8, 32
    x = jax.random.normal(k1, (B, F), dtype=jnp.float32)
    running_mean = 0.1 * jax.random.normal(k2, (F,), dtype=jnp.float32)

    out, new_rm = mean_only_batch_norm(x, running_mean, momentum=momentum, training=True)
    out = jax.block_until_ready(out)
    ref_out, ref_rm = _reference(x, running_mean, momentum, training=True)
    assert out.shape == x.shape and out.dtype == x.dtype
    assert jnp.allclose(out, ref_out, atol=1e-5, rtol=1e-5)
    assert jnp.allclose(new_rm, ref_rm, atol=1e-5, rtol=1e-5)

    out_e, rm_e = mean_only_batch_norm(x, running_mean, momentum=momentum, training=False)
    out_e = jax.block_until_ready(out_e)
    assert jnp.allclose(out_e, x - running_mean[None, :], atol=1e-5, rtol=1e-5)
    assert jnp.allclose(rm_e, running_mean)

    # 2) Larger shape: fused kernel with 2 parallel feature strips.
    B2, F2 = 512, 1024
    x2 = jax.random.normal(k3, (B2, F2), dtype=jnp.float32)
    rm2 = jnp.zeros((F2,), dtype=jnp.float32)
    out2, new_rm2 = mean_only_batch_norm(x2, rm2, momentum=momentum, training=True)
    out2 = jax.block_until_ready(out2)
    ref_out2, ref_rm2 = _reference(x2, rm2, momentum, training=True)
    assert jnp.allclose(out2, ref_out2, atol=1e-4, rtol=1e-4)
    assert jnp.allclose(new_rm2, ref_rm2, atol=1e-4, rtol=1e-4)

    # 3) Ragged shape (non-(8,128)-divisible): exercises cdiv grid edge handling.
    B3, F3 = 100, 200
    x3 = jax.random.normal(k4, (B3, F3), dtype=jnp.float32)
    rm3 = 0.05 * jnp.ones((F3,), dtype=jnp.float32)
    out3, new_rm3 = mean_only_batch_norm(x3, rm3, momentum=momentum, training=True)
    out3 = jax.block_until_ready(out3)
    ref_out3, ref_rm3 = _reference(x3, rm3, momentum, training=True)
    assert jnp.allclose(out3, ref_out3, atol=1e-4, rtol=1e-4)
    assert jnp.allclose(new_rm3, ref_rm3, atol=1e-4, rtol=1e-4)

    # 4) Force the two-pass fallback (used for very large B), including the
    #    masked ragged batch tile, to keep that path exercised.
    out4, new_rm4 = mean_only_batch_norm(x3, rm3, momentum=momentum, training=True,
                                         _force_two_pass=True)
    out4 = jax.block_until_ready(out4)
    assert jnp.allclose(out4, ref_out3, atol=1e-4, rtol=1e-4)
    assert jnp.allclose(new_rm4, ref_rm3, atol=1e-4, rtol=1e-4)

    out5, new_rm5 = mean_only_batch_norm(x2, rm2, momentum=momentum, training=True,
                                         _force_two_pass=True)
    out5 = jax.block_until_ready(out5)
    assert jnp.allclose(out5, ref_out2, atol=1e-4, rtol=1e-4)
    assert jnp.allclose(new_rm5, ref_rm2, atol=1e-4, rtol=1e-4)

    print("KERNEL_OK")
</pallas_src>

<mosaic_0001>
module attributes {stable_mosaic.version = 11 : i64} {
  func.func @_fused_train_kernel(%arg0: i32, %arg1: memref<8x32xf32, #tpu.memory_space<vmem>>, %arg2: memref<1x32xf32, #tpu.memory_space<vmem>>, %arg3: memref<8x32xf32, #tpu.memory_space<vmem>>, %arg4: memref<1x32xf32, #tpu.memory_space<vmem>>) attributes {dimension_semantics = [#tpu.dimension_semantics<parallel>], iteration_bounds = array<i64: 1>, scalar_prefetch = 0 : i64, scratch_operands = 0 : i64, tpu.core_type = #tpu.core_type<tc>, window_params = [{transform_indices = @transform_0, window_bounds = array<i64: 8, 32>}, {transform_indices = @transform_1, window_bounds = array<i64: 1, 32>}, {transform_indices = @transform_2, window_bounds = array<i64: 8, 32>}, {transform_indices = @transform_3, window_bounds = array<i64: 1, 32>}]} {
    %c0 = arith.constant 0 : index
    %c0_0 = arith.constant 0 : index
    %0 = vector.load %arg1[%c0, %c0_0] : memref<8x32xf32, #tpu.memory_space<vmem>>, vector<8x32xf32>
    %cst = arith.constant dense<0.000000e+00> : vector<32xf32>
    %1 = vector.multi_reduction <add>, %0, %cst [0] : vector<8x32xf32> to vector<32xf32>
    %2 = vector.shape_cast %1 : vector<32xf32> to vector<1x32xf32>
    %cst_1 = arith.constant 1.250000e-01 : f32
    %3 = vector.broadcast %cst_1 : f32 to vector<1x32xf32>
    %4 = arith.mulf %2, %3 : vector<1x32xf32>
    %cst_2 = arith.constant 9.990000e-01 : f32
    %5 = vector.broadcast %cst_2 : f32 to vector<1x32xf32>
    %6 = arith.mulf %5, %4 : vector<1x32xf32>
    %c0_3 = arith.constant 0 : index
    %c0_4 = arith.constant 0 : index
    %7 = vector.load %arg2[%c0_3, %c0_4] : memref<1x32xf32, #tpu.memory_space<vmem>>, vector<1x32xf32>
    %cst_5 = arith.constant 1.000000e-03 : f32
    %8 = vector.broadcast %cst_5 : f32 to vector<1x32xf32>
    %9 = arith.mulf %8, %7 : vector<1x32xf32>
    %10 = arith.addf %6, %9 : vector<1x32xf32>
    %11 = vector.broadcast %10 : vector<1x32xf32> to vector<8x32xf32>
    %12 = arith.subf %0, %11 : vector<8x32xf32>
    %c0_6 = arith.constant 0 : index
    %c0_7 = arith.constant 0 : index
    %13 = vector.load %arg3[%c0_6, %c0_7] : memref<8x32xf32, #tpu.memory_space<vmem>>, vector<8x32xf32>
    tpu.vector_store %arg3[%c0_6, %c0_7], %12 {strides = array<i32>} : memref<8x32xf32, #tpu.memory_space<vmem>>, vector<8x32xf32>,
    %c0_8 = arith.constant 0 : index
    %c0_9 = arith.constant 0 : index
    %14 = vector.load %arg4[%c0_8, %c0_9] : memref<1x32xf32, #tpu.memory_space<vmem>>, vector<1x32xf32>
    tpu.vector_store %arg4[%c0_8, %c0_9], %10 {strides = array<i32>} : memref<1x32xf32, #tpu.memory_space<vmem>>, vector<1x32xf32>,
    return
  }
  func.func @transform_0(%arg0: i32) -> (i32, i32) {
    %c0_i32 = arith.constant 0 : i32
    %c0_i32_0 = arith.constant 0 : i32
    return %c0_i32, %arg0 : i32, i32
  }
  func.func @transform_1(%arg0: i32) -> (i32, i32) {
    %c0_i32 = arith.constant 0 : i32
    %c0_i32_0 = arith.constant 0 : i32
    return %c0_i32, %arg0 : i32, i32
  }
  func.func @transform_2(%arg0: i32) -> (i32, i32) {
    %c0_i32 = arith.constant 0 : i32
    %c0_i32_0 = arith.constant 0 : i32
    return %c0_i32, %arg0 : i32, i32
  }
  func.func @transform_3(%arg0: i32) -> (i32, i32) {
    %c0_i32 = arith.constant 0 : i32
    %c0_i32_0 = arith.constant 0 : i32
    return %c0_i32, %arg0 : i32, i32
  }
}

</mosaic_0001>

<llo_original>
// kernel: tpu_custom_call.1
$region0: #{tpu_custom_call.1}
  #allocation0 [shape = 'u32[]', space=smem, size = 0x4, offset = 0x4, fixed_abs, tag = 'smem constant byte address 0x4 - core index']
  #allocation1 [shape = 'u32[72,128]{1,0:T(1,128)}', space=vmem, size = 0x9000, scoped, tag = 'internal scratch']
  %s0 = inlined_call_operand.hbm [shape: f32[8,32], index: 0, kind: input, shape index: {}]
  %s1 = inlined_call_operand.hbm [shape: f32[1,32], index: 1, kind: input, shape index: {}]
  %s2 = inlined_call_operand.hbm [shape: f32[8,32], index: 2, kind: output, shape index: {0}]
  %s3 = inlined_call_operand.hbm [shape: f32[1,32], index: 3, kind: output, shape index: {1}]
  %4 = xla_tuple %s2, %s3
  %s5 = sld [smem:[#allocation0]]
  $region34: #{tpu_custom_call.1} parent=0
    _
  %s7 = ssub.s32 1, %s5
  %s8 = scalar_select 0, %s7, %s5
  $region1: #{tpu_custom_call.1} parent=0
    #allocation2 [shape = 'u8[4096]{0}', space=vmem, size = 0x1000, scoped, tag = 'input window, operand 0, single buffered']
    #allocation3 [shape = 's32[1]{0}', space=sflag, size = 0x4, scoped, tag = 'scoped memory for tpu_custom_call.1']
    #allocation4 [shape = 's32[1]{0}', space=sflag, size = 0x4, scoped, tag = 'scoped memory for tpu_custom_call.1']
    #allocation5 [shape = 'u8[512]{0}', space=vmem, size = 0x400, scoped, tag = 'input window, operand 1, single buffered']
    #allocation6 [shape = 's32[1]{0}', space=sflag, size = 0x4, scoped, tag = 'scoped memory for tpu_custom_call.1']
    #allocation7 [shape = 'u8[4096]{0}', space=vmem, size = 0x1000, scoped, tag = 'output window, operand 0, single buffered']
    #allocation8 [shape = 'u8[512]{0}', space=vmem, size = 0x400, scoped, tag = 'output window, operand 1, single buffered']
    #allocation9 [shape = 's32[1]{0}', space=sflag, size = 0x4, scoped, tag = 'scoped memory for tpu_custom_call.1']
    %9 = vsyncpa [#allocation3], 0
    %10 = vsyncpa [#allocation6], 0
    %11 = vsyncpa [#allocation4], 0
    %12 = vsyncpa [#allocation9], 0
    // Predicated region
    $region2: #{tpu_custom_call.1} parent=1 // pred_check
      _
    $region3: #{tpu_custom_call.1} parent=1 // pred_check_branch
      %14 = sbr.rel (0) target = $region5
    $region4: #{tpu_custom_call.1} parent=1 // pred_region
      %16 = vsyncadd [#allocation3], 0
      %s18 = sshll.u32 %s0, 4
      %s19 = int_to_ptr.hbm [resolvable:$true] %s18
      %s20 = sshll.u32 [#allocation2], 4
      %s21 = int_to_ptr.vmem [resolvable:$true] %s20
      %23 = dma.hbm_to_vmem [thread:$0]  %s19, 128, %s21, [#allocation3]
    $region5: #{tpu_custom_call.1} parent=1 // pred_fallthru
      _
    // Predicated region
    $region6: #{tpu_custom_call.1} parent=1 // pred_check
      _
    $region7: #{tpu_custom_call.1} parent=1 // pred_check_branch
      %25 = sbr.rel (0) target = $region9
    $region8: #{tpu_custom_call.1} parent=1 // pred_region
      %27 = vsyncadd [#allocation6], 0
      %s29 = sshll.u32 %s1, 4
      %s30 = int_to_ptr.hbm [resolvable:$true] %s29
      %s31 = sshll.u32 [#allocation5], 4
      %s32 = int_to_ptr.vmem [resolvable:$true] %s31
      %34 = dma.hbm_to_vmem [thread:$0]  %s30, 16, %s32, [#allocation6]
    $region9: #{tpu_custom_call.1} parent=1 // pred_fallthru
      _
    // Predicated region
    $region10: #{tpu_custom_call.1} parent=1 // pred_check
      _
    $region11: #{tpu_custom_call.1} parent=1 // pred_check_branch
      %36 = sbr.rel (0) target = $region13
    $region12: #{tpu_custom_call.1} parent=1 // pred_region
      %38 = dma.done [#allocation3], 128
    $region13: #{tpu_custom_call.1} parent=1 // pred_fallthru
      _
    // Predicated region
    $region14: #{tpu_custom_call.1} parent=1 // pred_check
      _
    $region15: #{tpu_custom_call.1} parent=1 // pred_check_branch
      %40 = sbr.rel (0) target = $region17
    $region16: #{tpu_custom_call.1} parent=1 // pred_region
      %42 = dma.done [#allocation6], 16
    $region17: #{tpu_custom_call.1} parent=1 // pred_fallthru
      _
    %v43 = vld [vmem:[#allocation2] sm:$0xff]
    %vm44 = vcmask 261120
    %v45 = vsel %vm44, %v43, 0.0
    %v46 = vrot.slane %v45, 4
    %v47 = vadd.f32 %v45, %v46
    %v48 = vrot.slane %v47, 2
    %v49 = vadd.f32 %v47, %v48
    %v50 = vrot.slane %v49, 1
    %v51 = vadd.f32 %v49, %v50
    %v52 = vmul.f32 %v51, 0.125
    %v53 = vmul.f32 %v52, 0.999
    %v54 = vld [vmem:[#allocation5] sm:$0x1]
    %v55 = vmul.f32 %v54, 0.001
    %v56 = vadd.f32 %v53, %v55
    %v57 = vperm.slane %v56, 0
    %v58 = vsub.f32 %v43, %v57
    %59 = vst.msk [vmem:[#allocation7] sm:$0xff] %vm44, %v58
    %vm60 = vcmask 253952
    %61 = vst.msk [vmem:[#allocation8] sm:$0x1] %vm60, %v56
    // Predicated region
    $region18: #{tpu_custom_call.1} parent=1 // pred_check
      _
    $region19: #{tpu_custom_call.1} parent=1 // pred_check_branch
      %63 = sbr.rel (0) target = $region21
    $region20: #{tpu_custom_call.1} parent=1 // pred_region
      %65 = vsyncadd [#allocation4], 0
      %s67 = sshll.u32 [#allocation7], 4
      %s68 = int_to_ptr.vmem [resolvable:$true] %s67
      %s69 = sshll.u32 %s2, 4
      %s70 = int_to_ptr.hbm [resolvable:$true] %s69
      %72 = dma.vmem_to_hbm [thread:$0]  %s68, 128, %s70, [#allocation4]
    $region21: #{tpu_custom_call.1} parent=1 // pred_fallthru
      _
    // Predicated region
    $region22: #{tpu_custom_call.1} parent=1 // pred_check
      _
    $region23: #{tpu_custom_call.1} parent=1 // pred_check_branch
      %74 = sbr.rel (0) target = $region25
    $region24: #{tpu_custom_call.1} parent=1 // pred_region
      %76 = vsyncadd [#allocation9], 0
      %s78 = sshll.u32 [#allocation8], 4
      %s79 = int_to_ptr.vmem [resolvable:$true] %s78
      %s80 = sshll.u32 %s3, 4
      %s81 = int_to_ptr.hbm [resolvable:$true] %s80
      %83 = dma.vmem_to_hbm [thread:$0]  %s79, 16, %s81, [#allocation9]
    $region25: #{tpu_custom_call.1} parent=1 // pred_fallthru
      _
    // Predicated region
    $region26: #{tpu_custom_call.1} parent=1 // pred_check
      _
    $region27: #{tpu_custom_call.1} parent=1 // pred_check_branch
      %85 = sbr.rel (0) target = $region29
    $region28: #{tpu_custom_call.1} parent=1 // pred_region
      %87 = dma.done [#allocation4], 128
    $region29: #{tpu_custom_call.1} parent=1 // pred_fallthru
      _
    // Predicated region
    $region30: #{tpu_custom_call.1} parent=1 // pred_check
      _
    $region31: #{tpu_custom_call.1} parent=1 // pred_check_branch
      %89 = sbr.rel (0) target = $region33
    $region32: #{tpu_custom_call.1} parent=1 // pred_region
      %91 = dma.done [#allocation9], 16
    $region33: #{tpu_custom_call.1} parent=1 // pred_fallthru
      _
    %92 = vsyncpa [#allocation3], 1
    %93 = vsyncpa [#allocation6], 1
    %94 = vsyncpa [#allocation4], 1
    %95 = vsyncpa [#allocation9], 1

</llo_original>
